<compile_context>
chip_gen: v7x
topology: tpu7x:2x2x1
jax: 0.10.0
libtpu: 0.0.40
codegen_flags: <defaults>
</compile_context>

<pallas_src>
import math
from functools import partial

import jax
import jax.numpy as jnp
from jax.experimental import pallas as pl
from jax.experimental.pallas import tpu as pltpu

N_HEADS = 8
LN_EPS = 1e-5
_ROW_TILE_CAP = 1024   # sweepable (512 / 1024 / 2048 all fit VMEM easily)


def _ceil(a, b):
    return -(-a // b)


def _row_tiling(rows, cap=_ROW_TILE_CAP):
    """Pick (row_tile, padded_rows).

    * tile is a multiple of 8 and <= cap (amortizes the ~0.35us/step pipeline
      overhead given the tiny L-lane-wide per-row work),
    * padded_rows % tile == 0 (wrapper zero-pads, then slices the output),
    * the grid has >= 2 steps whenever rows >= 16 so the 'parallel' row axis
      shards across both v7x TensorCores.
    """
    r8 = _ceil(rows, 8) * 8
    if r8 <= 8:
        return 8, 8
    nsteps = max(2, _ceil(r8, cap))
    tm = _ceil(_ceil(r8, nsteps), 8) * 8
    padded = _ceil(r8, tm) * tm
    return tm, padded


def _mhtvi_fused_kernel(scale, d_model, x_ref, w_ref, b_ref, wo1_ref, wo2_ref,
                        bo_ref, o_ref):
    """Fused LN + (folded) in_proj/scores + value modulation + out_proj + res.

    Operates on a (TM, L) block of rows; all intermediates stay in VMEM/vregs.
    """
    x = x_ref[...]                                           # (TM, L)

    # LayerNorm stats in one pass (both row reductions issue together).
    mean = jnp.mean(x, axis=-1, keepdims=True)
    ex2 = jnp.mean(x * x, axis=-1, keepdims=True)
    var = jnp.maximum(ex2 - mean * mean, 0.0)
    xn = (x - mean) * jax.lax.rsqrt(var + LN_EPS)
    # (gamma/beta affine is folded into w_ref / b_ref by the wrapper)

    # One wide (TM, L) @ (L, 5*2L) matmul producing v and all four broadcast
    # score vectors at once.
    proj = jnp.dot(xn, w_ref[...], preferred_element_type=jnp.float32)
    proj = proj + b_ref[...]

    v   = proj[:, 0 * d_model:1 * d_model]
    s1q = proj[:, 1 * d_model:2 * d_model]
    s2k = proj[:, 2 * d_model:3 * d_model]
    s1k = proj[:, 3 * d_model:4 * d_model]
    s2q = proj[:, 4 * d_model:5 * d_model]

    sv = scale * v
    v1 = s1q * s2k * sv                                      # (TM, 2L)
    v2 = s1k * s2q * sv                                      # (TM, 2L)

    # out_projection on the split weight (== concat([v1, v2]) @ w_out)
    out = jnp.dot(v1, wo1_ref[...], preferred_element_type=jnp.float32)
    out = out + jnp.dot(v2, wo2_ref[...], preferred_element_type=jnp.float32)

    # bias + residual (dropout is identity at inference)
    o_ref[...] = out + bo_ref[...] + x


def mhtvi_forward(x, params):
    B, N, L = x.shape
    H = N_HEADS
    # TODO(synk): the folded score formulation relies on enc_in == n_heads
    # (then torch's .view(B, H, N, -1) is per-row column grouping); general
    # enc_in would need the chunk-gather head-view path.
    assert N == H, "kernel specialised to enc_in == n_heads (= 8)"
    assert (2 * L) % H == 0, "2*seq_len must be divisible by n_heads"

    d_model = 2 * L
    hd = d_model // H
    scale = 1.0 / math.sqrt(hd * N)
    dt = x.dtype
    hp = jax.lax.Precision.HIGHEST
    f32 = jnp.float32

    # ---- wrapper-side constant folding (f32, HIGHEST precision) -----------
    w1v = params["w1"].reshape(-1).astype(f32)               # (hd,)  mlp1
    w2v = params["w2"].reshape(-1).astype(f32)               # (H,)   mlp2
    b1 = params["b1"].reshape(()).astype(f32)
    b2 = params["b2"].reshape(()).astype(f32)
    # a1[i, j] = w1[i % hd] * (i // hd == j // hd)   (chunk score + broadcast)
    a1 = jnp.kron(jnp.eye(H, dtype=f32), w1v[:, None] * jnp.ones((1, hd), f32))
    # a2[i, j] = w2[i // hd] * (i % hd == j % hd)    (head score + broadcast)
    a2 = jnp.kron(w2v[:, None] * jnp.ones((1, H), f32), jnp.eye(hd, dtype=f32))

    w_in = params["w_in"].astype(f32)                        # (L, 6L)
    b_in = params["b_in"].reshape(-1).astype(f32)            # (6L,)
    w_q, w_k, w_v = (w_in[:, :d_model], w_in[:, d_model:2 * d_model],
                     w_in[:, 2 * d_model:])
    b_q, b_k, b_v = (b_in[:d_model], b_in[d_model:2 * d_model],
                     b_in[2 * d_model:])

    # fused in-projection: column groups [v | s1q | s2k | s1k | s2q]
    w_fused = jnp.concatenate([
        w_v,
        jnp.dot(w_q, a1, precision=hp),
        jnp.dot(w_k, a2, precision=hp),
        jnp.dot(w_k, a1, precision=hp),
        jnp.dot(w_q, a2, precision=hp),
    ], axis=1)                                               # (L, 5*d_model)
    b_fused = jnp.concatenate([
        b_v,
        jnp.dot(b_q, a1, precision=hp) + b1,
        jnp.dot(b_k, a2, precision=hp) + b2,
        jnp.dot(b_k, a1, precision=hp) + b1,
        jnp.dot(b_q, a2, precision=hp) + b2,
    ])                                                       # (5*d_model,)

    # fold the LayerNorm affine (gamma, beta) into the fused projection
    gamma = params["gamma"].reshape(-1).astype(f32)          # (L,)
    beta = params["beta"].reshape(-1).astype(f32)            # (L,)
    w_fold = (gamma[:, None] * w_fused).astype(dt)
    b_fold = (jnp.dot(beta, w_fused, precision=hp) + b_fused
              ).reshape(1, -1).astype(dt)

    wo1 = params["w_out"][:d_model].astype(dt)               # (2L, L)
    wo2 = params["w_out"][d_model:].astype(dt)               # (2L, L)
    b_out = params["b_out"].reshape(1, -1).astype(dt)        # (1, L)

    # ---- row flattening, tile choice, padding ------------------------------
    rows = B * N
    x2 = x.reshape(rows, L)                                  # free reshape
    tm, rows_p = _row_tiling(rows)
    if rows_p != rows:
        x2 = jnp.pad(x2, ((0, rows_p - rows), (0, 0)))
    grid = (rows_p // tm,)

    def const(shape):
        return pl.BlockSpec(shape, lambda i: (0, 0))

    out2 = pl.pallas_call(
        partial(_mhtvi_fused_kernel, scale, d_model),
        grid=grid,
        in_specs=[
            pl.BlockSpec((tm, L), lambda i: (i, 0)),          # x rows
            const((L, 5 * d_model)),                          # fused in-proj W
            const((1, 5 * d_model)),                          # fused in-proj b
            const((d_model, L)),                              # w_out[:2L]
            const((d_model, L)),                              # w_out[2L:]
            const((1, L)),                                    # b_out
        ],
        out_specs=pl.BlockSpec((tm, L), lambda i: (i, 0)),
        out_shape=jax.ShapeDtypeStruct((rows_p, L), dt),
        compiler_params=pltpu.CompilerParams(
            dimension_semantics=("parallel",)),
    )(x2, w_fold, b_fold, wo1, wo2, b_out)

    if rows_p != rows:
        out2 = out2[:rows]
    # TODO(synk): nn.Dropout treated as identity (inference / eval mode).
    return out2.reshape(B, N, L)


def reference(x, params):
    """Pure-JAX reference mirroring the PyTorch forward exactly."""
    B, N, L = x.shape
    H = N_HEADS
    d_model = 2 * L
    hd = d_model // H
    scale = 1.0 / math.sqrt(hd * N)
    hp = jax.lax.Precision.HIGHEST

    mean = x.mean(-1, keepdims=True)
    var = ((x - mean) ** 2).mean(-1, keepdims=True)
    xn = (x - mean) / jnp.sqrt(var + LN_EPS) * params["gamma"][0] + params["beta"][0]
    qkv = jnp.dot(xn, params["w_in"], precision=hp) + params["b_in"][0]
    q, k, v = jnp.split(qkv, 3, axis=-1)
    qh = q.reshape(B, H, N, hd)
    kh = k.reshape(B, H, N, hd)
    vh = v.reshape(B, H, N, hd)
    w1, b1 = params["w1"][0], params["b1"][0, 0]
    w2, b2 = params["w2"][0], params["b2"][0, 0]

    s1 = jnp.einsum("bhnd,d->bhn", qh, w1, precision=hp)[..., None] + b1
    s2 = (jnp.einsum("bhnd,n->bhd", kh, w2, precision=hp) + b2)[:, :, None, :]
    v1 = (s1 * s2 * scale * vh).reshape(B, N, d_model)
    s1 = jnp.einsum("bhnd,d->bhn", kh, w1, precision=hp)[..., None] + b1
    s2 = (jnp.einsum("bhnd,n->bhd", qh, w2, precision=hp) + b2)[:, :, None, :]
    v2 = (s1 * s2 * scale * vh).reshape(B, N, d_model)
    vcat = jnp.concatenate([v1, v2], axis=-1)
    out = jnp.dot(vcat, params["w_out"], precision=hp) + params["b_out"][0]
    return out + x


if __name__ == "__main__":
    B, enc_in, seq_len = 2, 8, 16                            # N == n_heads (required)
    d_model = 2 * seq_len
    hd = d_model // N_HEADS

    key = jax.random.PRNGKey(0)
    ks = jax.random.split(key, 13)
    x = jax.random.normal(ks[0], (B, enc_in, seq_len), jnp.float32)
    params = {
        # non-trivial LayerNorm affine to exercise the gamma/beta fold
        "gamma": 1.0 + 0.1 * jax.random.normal(ks[10], (1, seq_len), jnp.float32),
        "beta": 0.1 * jax.random.normal(ks[11], (1, seq_len), jnp.float32),
        "w_in": 0.05 * jax.random.normal(ks[1], (seq_len, 3 * d_model), jnp.float32),
        "b_in": 0.05 * jax.random.normal(ks[2], (1, 3 * d_model), jnp.float32),
        "w1": 0.1 * jax.random.normal(ks[3], (1, hd), jnp.float32),       # mlp1
        "b1": 0.1 * jax.random.normal(ks[4], (1, 1), jnp.float32),
        "w2": 0.1 * jax.random.normal(ks[5], (1, enc_in), jnp.float32),   # mlp2
        "b2": 0.1 * jax.random.normal(ks[6], (1, 1), jnp.float32),
        "w_out": 0.05 * jax.random.normal(ks[7], (2 * d_model, seq_len), jnp.float32),
        "b_out": 0.05 * jax.random.normal(ks[8], (1, seq_len), jnp.float32),
    }

    # small config (16 rows -> two 8-row grid steps)
    out = jax.block_until_ready(mhtvi_forward(x, params))
    ref = jax.block_until_ready(reference(x, params))
    assert out.shape == (B, enc_in, seq_len), out.shape
    err = float(jnp.max(jnp.abs(out - ref)))
    assert err < 1e-3, f"max abs error vs reference (small): {err}"

    # awkward batch: exercises row padding (536 -> 544 rows, 2 grid steps)
    xb = jax.random.normal(ks[9], (67, enc_in, seq_len), jnp.float32)
    out_b = jax.block_until_ready(mhtvi_forward(xb, params))
    ref_b = jax.block_until_ready(reference(xb, params))
    err_b = float(jnp.max(jnp.abs(out_b - ref_b)))
    assert err_b < 1e-3, f"max abs error vs reference (padded): {err_b}"

    # larger batch: exercises the tile cap / multi-step grid (3200 rows, 4 steps)
    xc = jax.random.normal(ks[12], (400, enc_in, seq_len), jnp.float32)
    out_c = jax.block_until_ready(mhtvi_forward(xc, params))
    ref_c = jax.block_until_ready(reference(xc, params))
    err_c = float(jnp.max(jnp.abs(out_c - ref_c)))
    assert err_c < 1e-3, f"max abs error vs reference (large): {err_c}"

    print("KERNEL_OK")
</pallas_src>

<mosaic_0001>
module attributes {stable_mosaic.version = 11 : i64} {
  func.func @_mhtvi_fused_kernel(%arg0: i32, %arg1: memref<8x16xf32, #tpu.memory_space<vmem>>, %arg2: memref<16x160xf32, #tpu.memory_space<vmem>>, %arg3: memref<1x160xf32, #tpu.memory_space<vmem>>, %arg4: memref<32x16xf32, #tpu.memory_space<vmem>>, %arg5: memref<32x16xf32, #tpu.memory_space<vmem>>, %arg6: memref<1x16xf32, #tpu.memory_space<vmem>>, %arg7: memref<8x16xf32, #tpu.memory_space<vmem>>) attributes {dimension_semantics = [#tpu.dimension_semantics<parallel>], iteration_bounds = array<i64: 2>, scalar_prefetch = 0 : i64, scratch_operands = 0 : i64, tpu.core_type = #tpu.core_type<tc>, window_params = [{transform_indices = @transform_0, window_bounds = array<i64: 8, 16>}, {pipeline_mode = #tpu.pipeline_mode<synchronous>, transform_indices = @transform_1, window_bounds = array<i64: 16, 160>}, {pipeline_mode = #tpu.pipeline_mode<synchronous>, transform_indices = @transform_2, window_bounds = array<i64: 1, 160>}, {pipeline_mode = #tpu.pipeline_mode<synchronous>, transform_indices = @transform_3, window_bounds = array<i64: 32, 16>}, {pipeline_mode = #tpu.pipeline_mode<synchronous>, transform_indices = @transform_4, window_bounds = array<i64: 32, 16>}, {pipeline_mode = #tpu.pipeline_mode<synchronous>, transform_indices = @transform_5, window_bounds = array<i64: 1, 16>}, {transform_indices = @transform_6, window_bounds = array<i64: 8, 16>}]} {
    %c0 = arith.constant 0 : index
    %c0_0 = arith.constant 0 : index
    %0 = vector.load %arg1[%c0, %c0_0] : memref<8x16xf32, #tpu.memory_space<vmem>>, vector<8x16xf32>
    %cst = arith.constant dense<0.000000e+00> : vector<8xf32>
    %1 = vector.multi_reduction <add>, %0, %cst [1] : vector<8x16xf32> to vector<8xf32>
    %2 = vector.shape_cast %1 : vector<8xf32> to vector<8x1xf32>
    %cst_1 = arith.constant 1.600000e+01 : f32
    %3 = vector.broadcast %cst_1 : f32 to vector<8x1xf32>
    %4 = arith.divf %2, %3 : vector<8x1xf32>
    %5 = arith.mulf %0, %0 : vector<8x16xf32>
    %cst_2 = arith.constant dense<0.000000e+00> : vector<8xf32>
    %6 = vector.multi_reduction <add>, %5, %cst_2 [1] : vector<8x16xf32> to vector<8xf32>
    %7 = vector.shape_cast %6 : vector<8xf32> to vector<8x1xf32>
    %cst_3 = arith.constant 1.600000e+01 : f32
    %8 = vector.broadcast %cst_3 : f32 to vector<8x1xf32>
    %9 = arith.divf %7, %8 : vector<8x1xf32>
    %10 = arith.mulf %4, %4 : vector<8x1xf32>
    %11 = arith.subf %9, %10 : vector<8x1xf32>
    %cst_4 = arith.constant 0.000000e+00 : f32
    %12 = vector.broadcast %cst_4 : f32 to vector<8x1xf32>
    %13 = arith.maximumf %11, %12 : vector<8x1xf32>
    %14 = vector.broadcast %4 : vector<8x1xf32> to vector<8x16xf32>
    %15 = arith.subf %0, %14 : vector<8x16xf32>
    %cst_5 = arith.constant 9.99999974E-6 : f32
    %16 = vector.broadcast %cst_5 : f32 to vector<8x1xf32>
    %17 = arith.addf %13, %16 : vector<8x1xf32>
    %18 = math.rsqrt %17 : vector<8x1xf32>
    %19 = vector.broadcast %18 : vector<8x1xf32> to vector<8x16xf32>
    %20 = arith.mulf %15, %19 : vector<8x16xf32>
    %c0_6 = arith.constant 0 : index
    %c0_7 = arith.constant 0 : index
    %21 = vector.load %arg2[%c0_6, %c0_7] : memref<16x160xf32, #tpu.memory_space<vmem>>, vector<16x160xf32>
    %cst_8 = arith.constant dense<0.000000e+00> : vector<8x160xf32>
    %22 = tpu.matmul %20, %21, %cst_8 {dimension_numbers = #tpu.dot_dimension_numbers<[1], [0], [0], [1], [0, 0, 1, 1], [], []>} : vector<8x16xf32>, vector<16x160xf32>, vector<8x160xf32> -> vector<8x160xf32>
    %c0_9 = arith.constant 0 : index
    %c0_10 = arith.constant 0 : index
    %23 = vector.load %arg3[%c0_9, %c0_10] : memref<1x160xf32, #tpu.memory_space<vmem>>, vector<1x160xf32>
    %24 = vector.broadcast %23 : vector<1x160xf32> to vector<8x160xf32>
    %25 = arith.addf %22, %24 : vector<8x160xf32>
    %26 = vector.extract_strided_slice %25 {offsets = [0, 0], sizes = [8, 32], strides = [1, 1]} : vector<8x160xf32> to vector<8x32xf32>
    %27 = vector.extract_strided_slice %25 {offsets = [0, 32], sizes = [8, 32], strides = [1, 1]} : vector<8x160xf32> to vector<8x32xf32>
    %28 = vector.extract_strided_slice %25 {offsets = [0, 64], sizes = [8, 32], strides = [1, 1]} : vector<8x160xf32> to vector<8x32xf32>
    %29 = vector.extract_strided_slice %25 {offsets = [0, 96], sizes = [8, 32], strides = [1, 1]} : vector<8x160xf32> to vector<8x32xf32>
    %30 = vector.extract_strided_slice %25 {offsets = [0, 128], sizes = [8, 32], strides = [1, 1]} : vector<8x160xf32> to vector<8x32xf32>
    %cst_11 = arith.constant 0.176776692 : f32
    %31 = vector.broadcast %cst_11 : f32 to vector<8x32xf32>
    %32 = arith.mulf %31, %26 : vector<8x32xf32>
    %33 = arith.mulf %27, %28 : vector<8x32xf32>
    %34 = arith.mulf %33, %32 : vector<8x32xf32>
    %35 = arith.mulf %29, %30 : vector<8x32xf32>
    %36 = arith.mulf %35, %32 : vector<8x32xf32>
    %c0_12 = arith.constant 0 : index
    %c0_13 = arith.constant 0 : index
    %37 = vector.load %arg4[%c0_12, %c0_13] : memref<32x16xf32, #tpu.memory_space<vmem>>, vector<32x16xf32>
    %cst_14 = arith.constant dense<0.000000e+00> : vector<8x16xf32>
    %38 = tpu.matmul %34, %37, %cst_14 {dimension_numbers = #tpu.dot_dimension_numbers<[1], [0], [0], [1], [0, 0, 1, 1], [], []>} : vector<8x32xf32>, vector<32x16xf32>, vector<8x16xf32> -> vector<8x16xf32>
    %c0_15 = arith.constant 0 : index
    %c0_16 = arith.constant 0 : index
    %39 = vector.load %arg5[%c0_15, %c0_16] : memref<32x16xf32, #tpu.memory_space<vmem>>, vector<32x16xf32>
    %cst_17 = arith.constant dense<0.000000e+00> : vector<8x16xf32>
    %40 = tpu.matmul %36, %39, %cst_17 {dimension_numbers = #tpu.dot_dimension_numbers<[1], [0], [0], [1], [0, 0, 1, 1], [], []>} : vector<8x32xf32>, vector<32x16xf32>, vector<8x16xf32> -> vector<8x16xf32>
    %41 = arith.addf %38, %40 : vector<8x16xf32>
    %c0_18 = arith.constant 0 : index
    %c0_19 = arith.constant 0 : index
    %42 = vector.load %arg6[%c0_18, %c0_19] : memref<1x16xf32, #tpu.memory_space<vmem>>, vector<1x16xf32>
    %43 = vector.broadcast %42 : vector<1x16xf32> to vector<8x16xf32>
    %44 = arith.addf %41, %43 : vector<8x16xf32>
    %45 = arith.addf %44, %0 : vector<8x16xf32>
    %c0_20 = arith.constant 0 : index
    %c0_21 = arith.constant 0 : index
    %46 = vector.load %arg7[%c0_20, %c0_21] : memref<8x16xf32, #tpu.memory_space<vmem>>, vector<8x16xf32>
    tpu.vector_store %arg7[%c0_20, %c0_21], %45 {strides = array<i32>} : memref<8x16xf32, #tpu.memory_space<vmem>>, vector<8x16xf32>,
    return
  }
  func.func @transform_0(%arg0: i32) -> (i32, i32) {
    %c0_i32 = arith.constant 0 : i32
    %c0_i32_0 = arith.constant 0 : i32
    return %arg0, %c0_i32 : i32, i32
  }
  func.func @transform_1(%arg0: i32) -> (i32, i32) {
    %c0_i32 = arith.constant 0 : i32
    %c0_i32_0 = arith.constant 0 : i32
    %c0_i32_1 = arith.constant 0 : i32
    return %c0_i32, %c0_i32_0 : i32, i32
  }
  func.func @transform_2(%arg0: i32) -> (i32, i32) {
    %c0_i32 = arith.constant 0 : i32
    %c0_i32_0 = arith.constant 0 : i32
    %c0_i32_1 = arith.constant 0 : i32
    return %c0_i32, %c0_i32_0 : i32, i32
  }
  func.func @transform_3(%arg0: i32) -> (i32, i32) {
    %c0_i32 = arith.constant 0 : i32
    %c0_i32_0 = arith.constant 0 : i32
    %c0_i32_1 = arith.constant 0 : i32
    return %c0_i32, %c0_i32_0 : i32, i32
  }
  func.func @transform_4(%arg0: i32) -> (i32, i32) {
    %c0_i32 = arith.constant 0 : i32
    %c0_i32_0 = arith.constant 0 : i32
    %c0_i32_1 = arith.constant 0 : i32
    return %c0_i32, %c0_i32_0 : i32, i32
  }
  func.func @transform_5(%arg0: i32) -> (i32, i32) {
    %c0_i32 = arith.constant 0 : i32
    %c0_i32_0 = arith.constant 0 : i32
    %c0_i32_1 = arith.constant 0 : i32
    return %c0_i32, %c0_i32_0 : i32, i32
  }
  func.func @transform_6(%arg0: i32) -> (i32, i32) {
    %c0_i32 = arith.constant 0 : i32
    %c0_i32_0 = arith.constant 0 : i32
    return %arg0, %c0_i32 : i32, i32
  }
}

</mosaic_0001>

<llo_original>
// kernel: tpu_custom_call.1
$region0: #{tpu_custom_call.1}
  #allocation0 [shape = 'u32[]', space=smem, size = 0x4, offset = 0x4, fixed_abs, tag = 'smem constant byte address 0x4 - core index']
  #allocation1 [shape = 'u32[144,128]{1,0:T(1,128)}', space=vmem, size = 0x12000, scoped, tag = 'internal scratch']
  %s0 = inlined_call_operand.vmem [shape: f32[16,16], index: 0, kind: input, shape index: {}]
  %s1 = inlined_call_operand.vmem [shape: f32[16,160], index: 1, kind: input, shape index: {}]
  %s2 = inlined_call_operand.vmem [shape: f32[1,160], index: 2, kind: input, shape index: {}]
  %s3 = inlined_call_operand.vmem [shape: f32[32,16], index: 3, kind: input, shape index: {}]
  %s4 = inlined_call_operand.vmem [shape: f32[32,16], index: 4, kind: input, shape index: {}]
  %s5 = inlined_call_operand.vmem [shape: f32[1,16], index: 5, kind: input, shape index: {}]
  %s6 = inlined_call_operand.hbm [shape: f32[16,16], index: 6, kind: output, shape index: {}]
  %s7 = sld [smem:[#allocation0]]
  $region57: #{tpu_custom_call.1} parent=0
    _
  %s9 = ssub.s32 1, %s7
  %s10 = scalar_select 0, %s9, %s7
  $region1: #{tpu_custom_call.1} parent=0
    #allocation2 [shape = 'u8[8192]{0}', space=vmem, size = 0x2000, scoped, tag = 'output window, operand 0']
    #allocation3 [shape = 's32[2]{0}', space=sflag, size = 0x8, scoped, tag = 'scoped memory for tpu_custom_call.1']
    %11 = vsyncpa [#allocation3], 0
    %s12 = scalar_lea.sflag [#allocation3], 1
    %13 = vsyncpa %s12, 0
    loop: start=0, step=1, limit=4
    $region2: #{tpu_custom_call.1} parent=1 // loop_pre_header
      _
    $region3: #{tpu_custom_call.1} parent=1 // loop_header
      %s15 = sphi 0, %s19
      %p16 = scmp.ge.s32.totalorder %s15, 4
      %s25 = sphi 0, %s27
      %s28 = sphi 0, %s25
      %s29 = sphi 0, %s28
      %s45 = sphi 0, %s29
      %s49 = sphi 0, %s49
      %s51 = sphi 0, %s49
      %s52 = sphi 0, %s51
      %s66 = sphi 0, %s52
      %s70 = sphi 0, %s70
      %s72 = sphi 0, %s70
      %s73 = sphi 0, %s72
      %s87 = sphi 0, %s73
      %s91 = sphi 0, %s91
      %s93 = sphi 0, %s91
      %s94 = sphi 0, %s93
      %s108 = sphi 0, %s94
      %s112 = sphi 0, %s112
      %s114 = sphi 0, %s112
      %s115 = sphi 0, %s114
      %s129 = sphi 0, %s115
      %s133 = sphi 0, %s133
      %s135 = sphi 0, %s133
      %s136 = sphi 0, %s135
      %s150 = sphi 0, %s136
      %s156 = sphi 0, %s158
      %s159 = sphi 0, %s156
      %s160 = sphi 0, %s159
      %s176 = sphi 0, %s160
    $region4: #{tpu_custom_call.1} parent=1 // loop_header_branch
      %18 = sbr.rel (%p16) target = $region8
    $region5: #{tpu_custom_call.1} parent=1 // loop_body
      %s20 = ssub.s32 %s15, 1
      %s21 = ssub.s32 %s15, 2
      %s22 = sadd.s32 %s15, 1
      %s23 = ssub.s32 %s15, %s22
      %p24 = scmp.eq.s32.totalorder %s23, 0
      %s26 = sadd.s32 %s25, 1
      %s27 = scalar_select %p24, %s25, %s26
      %p30 = pneg %p24
      %p31 = scmp.eq.s32.totalorder %s15, 1
      %p32 = por %p30, %p31
      %p33 = scmp.ne.s32.totalorder %s25, %s28
      %p34 = scmp.eq.s32.totalorder %s15, 0
      %p35 = por %p33, %p34
      %p36 = scmp.ne.s32.totalorder %s25, %s28
      %p37 = scmp.eq.s32.totalorder %s20, 1
      %p38 = por %p36, %p37
      %p39 = scmp.ne.s32.totalorder %s28, %s29
      %p40 = scmp.eq.s32.totalorder %s20, 0
      %p41 = por %p39, %p40
      %p42 = scmp.ne.s32.totalorder %s28, %s29
      %p43 = scmp.eq.s32.totalorder %s21, 1
      %p44 = por %p42, %p43
      %p46 = scmp.ne.s32.totalorder %s29, %s45
      %p47 = scmp.eq.s32.totalorder %s21, 0
      %p48 = por %p46, %p47
      %s50 = sadd.s32 %s49, 1
      %p53 = scmp.eq.s32.totalorder %s15, 1
      %p54 = scmp.ne.s32.totalorder %s49, %s51
      %p55 = scmp.eq.s32.totalorder %s15, 0
      %p56 = por %p54, %p55
      %p57 = scmp.ne.s32.totalorder %s49, %s51
      %p58 = scmp.eq.s32.totalorder %s20, 1
      %p59 = por %p57, %p58
      %p60 = scmp.ne.s32.totalorder %s51, %s52
      %p61 = scmp.eq.s32.totalorder %s20, 0
      %p62 = por %p60, %p61
      %p63 = scmp.ne.s32.totalorder %s51, %s52
      %p64 = scmp.eq.s32.totalorder %s21, 1
      %p65 = por %p63, %p64
      %p67 = scmp.ne.s32.totalorder %s52, %s66
      %p68 = scmp.eq.s32.totalorder %s21, 0
      %p69 = por %p67, %p68
      %s71 = sadd.s32 %s70, 1
      %p74 = scmp.eq.s32.totalorder %s15, 1
      %p75 = scmp.ne.s32.totalorder %s70, %s72
      %p76 = scmp.eq.s32.totalorder %s15, 0
      %p77 = por %p75, %p76
      %p78 = scmp.ne.s32.totalorder %s70, %s72
      %p79 = scmp.eq.s32.totalorder %s20, 1
      %p80 = por %p78, %p79
      %p81 = scmp.ne.s32.totalorder %s72, %s73
      %p82 = scmp.eq.s32.totalorder %s20, 0
      %p83 = por %p81, %p82
      %p84 = scmp.ne.s32.totalorder %s72, %s73
      %p85 = scmp.eq.s32.totalorder %s21, 1
      %p86 = por %p84, %p85
      %p88 = scmp.ne.s32.totalorder %s73, %s87
      %p89 = scmp.eq.s32.totalorder %s21, 0
      %p90 = por %p88, %p89
      %s92 = sadd.s32 %s91, 1
      %p95 = scmp.eq.s32.totalorder %s15, 1
      %p96 = scmp.ne.s32.totalorder %s91, %s93
      %p97 = scmp.eq.s32.totalorder %s15, 0
      %p98 = por %p96, %p97
      %p99 = scmp.ne.s32.totalorder %s91, %s93
      %p100 = scmp.eq.s32.totalorder %s20, 1
      %p101 = por %p99, %p100
      %p102 = scmp.ne.s32.totalorder %s93, %s94
      %p103 = scmp.eq.s32.totalorder %s20, 0
      %p104 = por %p102, %p103
      %p105 = scmp.ne.s32.totalorder %s93, %s94
      %p106 = scmp.eq.s32.totalorder %s21, 1
      %p107 = por %p105, %p106
      %p109 = scmp.ne.s32.totalorder %s94, %s108
      %p110 = scmp.eq.s32.totalorder %s21, 0
      %p111 = por %p109, %p110
      %s113 = sadd.s32 %s112, 1
      %p116 = scmp.eq.s32.totalorder %s15, 1
      %p117 = scmp.ne.s32.totalorder %s112, %s114
      %p118 = scmp.eq.s32.totalorder %s15, 0
      %p119 = por %p117, %p118
      %p120 = scmp.ne.s32.totalorder %s112, %s114
      %p121 = scmp.eq.s32.totalorder %s20, 1
      %p122 = por %p120, %p121
      %p123 = scmp.ne.s32.totalorder %s114, %s115
      %p124 = scmp.eq.s32.totalorder %s20, 0
      %p125 = por %p123, %p124
      %p126 = scmp.ne.s32.totalorder %s114, %s115
      %p127 = scmp.eq.s32.totalorder %s21, 1
      %p128 = por %p126, %p127
      %p130 = scmp.ne.s32.totalorder %s115, %s129
      %p131 = scmp.eq.s32.totalorder %s21, 0
      %p132 = por %p130, %p131
      %s134 = sadd.s32 %s133, 1
      %p137 = scmp.eq.s32.totalorder %s15, 1
      %p138 = scmp.ne.s32.totalorder %s133, %s135
      %p139 = scmp.eq.s32.totalorder %s15, 0
      %p140 = por %p138, %p139
      %p141 = scmp.ne.s32.totalorder %s133, %s135
      %p142 = scmp.eq.s32.totalorder %s20, 1
      %p143 = por %p141, %p142
      %p144 = scmp.ne.s32.totalorder %s135, %s136
      %p145 = scmp.eq.s32.totalorder %s20, 0
      %p146 = por %p144, %p145
      %p147 = scmp.ne.s32.totalorder %s135, %s136
      %p148 = scmp.eq.s32.totalorder %s21, 1
      %p149 = por %p147, %p148
      %p151 = scmp.ne.s32.totalorder %s136, %s150
      %p152 = scmp.eq.s32.totalorder %s21, 0
      %p153 = por %p151, %p152
      %s154 = ssub.s32 %s15, %s22
      %p155 = scmp.eq.s32.totalorder %s154, 0
      %s157 = sadd.s32 %s156, 1
      %s158 = scalar_select %p155, %s156, %s157
      %p161 = pneg %p155
      %p162 = scmp.eq.s32.totalorder %s15, 1
      %p163 = por %p161, %p162
      %p164 = scmp.ne.s32.totalorder %s156, %s159
      %p165 = scmp.eq.s32.totalorder %s15, 0
      %p166 = por %p164, %p165
      %p167 = scmp.ne.s32.totalorder %s156, %s159
      %p168 = scmp.eq.s32.totalorder %s20, 1
      %p169 = por %p167, %p168
      %p170 = scmp.ne.s32.totalorder %s159, %s160
      %p171 = scmp.eq.s32.totalorder %s20, 0
      %p172 = por %p170, %p171
      %p173 = scmp.ne.s32.totalorder %s159, %s160
      %p174 = scmp.eq.s32.totalorder %s21, 1
      %p175 = por %p173, %p174
      %p177 = scmp.ne.s32.totalorder %s160, %s176
      %p178 = scmp.eq.s32.totalorder %s21, 0
      %p179 = por %p177, %p178
      %p180 = scmp.le.s32.totalorder 1, %s15
      %p181 = scmp.lt.s32.totalorder %s15, 3
      %p182 = pnand %p180, %p181
      %p183 = pneg %p182
      // Predicated region
      $region9: #{tpu_custom_call.1} parent=5 // pred_check
        _
      $region10: #{tpu_custom_call.1} parent=5 // pred_check_branch
        %185 = sbr.rel (%p182) target = $region12
      $region11: #{tpu_custom_call.1} parent=5 // pred_region
        %s186 = ssub.s32 %s15, 1
        // Predicated region
        $region13: #{tpu_custom_call.1} parent=11 // pred_check
          %p187 = pneg %p62
        $region14: #{tpu_custom_call.1} parent=11 // pred_check_branch
          %189 = sbr.rel (%p187) target = $region16
        $region15: #{tpu_custom_call.1} parent=11 // pred_region
          _
        $region16: #{tpu_custom_call.1} parent=11 // pred_fallthru
          _
        // Predicated region
        $region17: #{tpu_custom_call.1} parent=11 // pred_check
          %p190 = pneg %p83
        $region18: #{tpu_custom_call.1} parent=11 // pred_check_branch
          %192 = sbr.rel (%p190) target = $region20
        $region19: #{tpu_custom_call.1} parent=11 // pred_region
          _
        $region20: #{tpu_custom_call.1} parent=11 // pred_fallthru
          _
        // Predicated region
        $region21: #{tpu_custom_call.1} parent=11 // pred_check
          %p193 = pneg %p104
        $region22: #{tpu_custom_call.1} parent=11 // pred_check_branch
          %195 = sbr.rel (%p193) target = $region24
        $region23: #{tpu_custom_call.1} parent=11 // pred_region
          _
        $region24: #{tpu_custom_call.1} parent=11 // pred_fallthru
          _
        // Predicated region
        $region25: #{tpu_custom_call.1} parent=11 // pred_check
          %p196 = pneg %p125
        $region26: #{tpu_custom_call.1} parent=11 // pred_check_branch
          %198 = sbr.rel (%p196) target = $region28
        $region27: #{tpu_custom_call.1} parent=11 // pred_region
          _
        $region28: #{tpu_custom_call.1} parent=11 // pred_fallthru
          _
        // Predicated region
        $region29: #{tpu_custom_call.1} parent=11 // pred_check
          %p199 = pneg %p146
        $region30: #{tpu_custom_call.1} parent=11 // pred_check_branch
          %201 = sbr.rel (%p199) target = $region32
        $region31: #{tpu_custom_call.1} parent=11 // pred_region
          _
        $region32: #{tpu_custom_call.1} parent=11 // pred_fallthru
          _
      $region12: #{tpu_custom_call.1} parent=5 // pred_fallthru
        _
      %p202 = scmp.lt.s32.totalorder %s15, 2
      // Predicated region
      $region33: #{tpu_custom_call.1} parent=5 // pred_check
        %p203 = pneg %p202
      $region34: #{tpu_custom_call.1} parent=5 // pred_check_branch
        %205 = sbr.rel (%p203) target = $region36
      $region35: #{tpu_custom_call.1} parent=5 // pred_region
        // Predicated region
        $region37: #{tpu_custom_call.1} parent=35 // pred_check
          %p206 = pneg %p35
        $region38: #{tpu_custom_call.1} parent=35 // pred_check_branch
          %208 = sbr.rel (%p206) target = $region40
        $region39: #{tpu_custom_call.1} parent=35 // pred_region
          %p209 = scmp.lt.s32.totalorder %s15, 1
          %s210 = scalar_select %p209, %s15, 1
          %s211 = smul.addr %s210, 8
          %s212 = scalar_lea.vmem %s0, %s211
        $region40: #{tpu_custom_call.1} parent=35 // pred_fallthru
          _
      $region36: #{tpu_custom_call.1} parent=5 // pred_fallthru
        _
      %p213 = scmp.le.s32.totalorder 1, %s15
      %p214 = scmp.lt.s32.totalorder %s15, 3
      %p215 = pnand %p213, %p214
      %p216 = pneg %p215
      // Predicated region
      $region41: #{tpu_custom_call.1} parent=5 // pred_check
        _
      $region42: #{tpu_custom_call.1} parent=5 // pred_check_branch
        %218 = sbr.rel (%p215) target = $region44
      $region43: #{tpu_custom_call.1} parent=5 // pred_region
        %s219 = ssub.s32 %s15, 1
        %p220 = scmp.lt.s32.totalorder %s20, 1
        %s221 = scalar_select %p220, %s20, 1
        %s222 = smul.addr %s221, 8
        %s223 = scalar_lea.vmem %s0, %s222
        %p224 = pneg %p41
        %p225 = pneg %p38
        %p226 = pneg %p62
        %p227 = pneg %p59
        %p228 = pneg %p83
        %p229 = pneg %p80
        %p230 = pneg %p104
        %p231 = pneg %p101
        %p232 = pneg %p125
        %p233 = pneg %p122
        %p234 = pneg %p146
        %p235 = pneg %p143
        %p236 = pneg %p172
        %p237 = pneg %p169
        %s238 = sand.u32 %s159, 1
        %s239 = scalar_lea.sflag [#allocation3], %s238
        %s240 = sand.u32 %s159, 1
        %s241 = smul.addr %s240, 8
        %s242 = scalar_lea.vmem [#allocation2], %s241
        %p243 = scmp.lt.s32.totalorder %s20, 1
        %s244 = scalar_select %p243, %s20, 1
        %s245 = smul.addr %s244, 8
        %s246 = scalar_lea.vmem %s0, %s245
        %v247 = vld [vmem:[%s246] sm:$0xff]
        %vm248 = vcmask 130048
        %v249 = vsel %vm248, %v247, 0.0
        %250 = vadd.xlane.f32.xlu0 %v249
        %v251 = vpop.xlane.xlu0 %250
        %v252 = vrcp.pop 16.0
        %v253 = vmul.f32 %v251, %v252
        %v254 = vmul.f32 %v247, %v247
        %v255 = vsel %vm248, %v254, 0.0
        %256 = vadd.xlane.f32.xlu0 %v255
        %v257 = vpop.xlane.xlu0 %256
        %v258 = vmul.f32 %v257, %v252
        %v259 = vmul.f32 %v253, %v253
        %v260 = vsub.f32 %v258, %v259
        %v261 = vmax.f32 %v260, 0.0
        %v262 = vsub.f32 %v247, %v253
        %v263 = vadd.f32 %v261, 1e-05
        %v264 = vrsqrt.pop %v263
        %v265 = vmul.f32 %v262, %v264
        %v266 = vld [vmem:[%s1] sm:$0xff]
        %v267 = vld [vmem:[%s1 + $0x8] sm:$0xff]
        %v268 = vld [vmem:[%s1 + $0x10] sm:$0xff]
        %v269 = vld [vmem:[%s1 + $0x18] sm:$0xff]
        %v270 = vld [vmem:[%s2] sm:$0x3]
        %v272 = vlaneseq
        %v273 = vshrl.u32 %v272, 7
        %v274 = vsub.s32 0, %v273
        %v275 = vrot.slane %v270, %v274
        %v276 = vlaneseq
        %v277 = vshrl.u32 %v276, 7
        %v278 = vsub.s32 1, %v277
        %v279 = vrot.slane %v270, %v278
        %v283 = vsel %vm248, %v265, 0
        %285 = vmatprep.subr.mxu0 %v267
        %286 = vmatpush1.msra.mxu0 %v266
        %287 = vmatprep.subr.mxu0 %v269
        %288 = vmatpush1.msra.mxu0 %v268
        %289 = vmatprep.subr.mxu0 0.0
        %290 = vmatpush1.msra.mxu0 0.0
        %291 = vmatprep.subr.mxu0 0.0
        %292 = vmatpush1.msra.mxu0 0.0
        %293 = vmatprep.subr.mxu0 0.0
        %294 = vmatpush1.msra.mxu0 0.0
        %295 = vmatprep.subr.mxu0 0.0
        %296 = vmatpush1.msra.mxu0 0.0
        %297 = vmatprep.subr.mxu0 0.0
        %298 = vmatpush1.msra.mxu0 0.0
        %299 = vmatprep.subr.mxu0 0.0
        %300 = vmatpush1.msra.mxu0 0.0
        %301 = vmatprep.subr.mxu0 0.0
        %302 = vmatpush1.msra.mxu0 0.0
        %303 = vmatprep.subr.mxu0 0.0
        %304 = vmatpush1.msra.mxu0 0.0
        %305 = vmatprep.subr.mxu0 0.0
        %306 = vmatpush1.msra.mxu0 0.0
        %307 = vmatprep.subr.mxu0 0.0
        %308 = vmatpush1.msra.mxu0 0.0
        %309 = vmatprep.subr.mxu0 0.0
        %310 = vmatpush1.msra.mxu0 0.0
        %311 = vmatprep.subr.mxu0 0.0
        %312 = vmatpush1.msra.mxu0 0.0
        %313 = vmatprep.subr.mxu0 0.0
        %314 = vmatpush1.msra.mxu0 0.0
        %315 = vmatprep.subr.mxu0 0.0
        %316 = vmatpush1.msra.mxu0 0.0
        %317 = vmatprep.subr.mxu0 0.0
        %318 = vmatpush1.msra.mxu0 0.0
        %319 = vmatprep.subr.mxu0 0.0
        %320 = vmatpush1.msra.mxu0 0.0
        %321 = vmatprep.subr.mxu0 0.0
        %322 = vmatpush1.msra.mxu0 0.0
        %323 = vmatprep.subr.mxu0 0.0
        %324 = vmatpush1.msra.mxu0 0.0
        %325 = vmatprep.subr.mxu0 0.0
        %326 = vmatpush1.msra.mxu0 0.0
        %327 = vmatprep.subr.mxu0 0.0
        %328 = vmatpush1.msra.mxu0 0.0
        %329 = vmatprep.subr.mxu0 0.0
        %330 = vmatpush1.msra.mxu0 0.0
        %331 = vmatprep.subr.mxu0 0.0
        %332 = vmatpush1.msra.mxu0 0.0
        %333 = vmatprep.subr.mxu0 0.0
        %334 = vmatpush1.msra.mxu0 0.0
        %335 = vmatprep.subr.mxu0 0.0
        %336 = vmatpush1.msra.mxu0 0.0
        %337 = vmatprep.subr.mxu0 0.0
        %338 = vmatpush1.msra.mxu0 0.0
        %339 = vmatprep.subr.mxu0 0.0
        %340 = vmatpush1.msra.mxu0 0.0
        %341 = vmatprep.subr.mxu0 0.0
        %342 = vmatpush1.msra.mxu0 0.0
        %343 = vmatprep.subr.mxu0 0.0
        %344 = vmatpush1.msra.mxu0 0.0
        %345 = vmatprep.subr.mxu0 0.0
        %346 = vmatpush1.msra.mxu0 0.0
        %347 = vmatprep.subr.mxu0 0.0
        %348 = vmatpush1.msra.mxu0 0.0
        %349 = vmatprep.mubr.f32.mxu0 0.0
        %350 = vmatmul.mubr.f32.gmra.mrb[0].mxu0 %v283
        %v351 = vpop.f32.mrb[0].mxu0
        %v352 = vadd.f32 %v275, %v351
        %v353 = vpop.f32.mrb[0].mxu0
        %v354 = vadd.f32 %v279, %v353
        %355 = vdwg.mxu0
        %v356 = vmul.f32 %v352, 0.17677669
        %358 = vrot.lane.b32.xlu0 %v352, 96
        %v359 = vpop.permute.xlu0 %358
        %v361 = vmul.f32 %v352, %v359
        %363 = vrot.lane.b32.xlu0 %v356, 32
        %v364 = vpop.permute.xlu0 %363
        %v366 = vmul.f32 %v361, %v364
        %368 = vrot.lane.b32.xlu0 %v354, 96
        %v369 = vpop.permute.xlu0 %368
        %v371 = vmul.f32 %v352, %v369
        %372 = vrot.lane.b32.xlu0 %v356, 96
        %v373 = vpop.permute.xlu0 %372
        %v375 = vmul.f32 %v371, %v373
        %v376 = vld [vmem:[%s3] sm:$0xff]
        %v377 = vld [vmem:[%s3 + $0x8] sm:$0xff]
        %v378 = vld [vmem:[%s3 + $0x10] sm:$0xff]
        %v379 = vld [vmem:[%s3 + $0x18] sm:$0xff]
        %v380 = vld [vmem:[%s4] sm:$0xff]
        %v381 = vld [vmem:[%s4 + $0x8] sm:$0xff]
        %v382 = vld [vmem:[%s4 + $0x10] sm:$0xff]
        %v383 = vld [vmem:[%s4 + $0x18] sm:$0xff]
        %385 = vrot.lane.b32.xlu0 %v375, 32
        %v386 = vpop.permute.xlu0 %385
        %vm387 = vcmask 261120
        %v388 = vsel %vm387, %v386, 0
        %390 = vmatprep.subr.mxu0 0.0
        %391 = vmatpush1.msra.mxu0 %v380
        %392 = vmatprep.subr.mxu0 0.0
        %393 = vmatpush1.msra.mxu0 %v381
        %394 = vmatprep.subr.mxu0 0.0
        %395 = vmatpush1.msra.mxu0 %v382
        %396 = vmatprep.subr.mxu0 0.0
        %397 = vmatpush1.msra.mxu0 %v383
        %398 = vmatprep.subr.mxu0 0.0
        %399 = vmatpush1.msra.mxu0 0.0
        %400 = vmatprep.subr.mxu0 0.0
        %401 = vmatpush1.msra.mxu0 0.0
        %402 = vmatprep.subr.mxu0 0.0
        %403 = vmatpush1.msra.mxu0 0.0
        %404 = vmatprep.subr.mxu0 0.0
        %405 = vmatpush1.msra.mxu0 0.0
        %406 = vmatprep.subr.mxu0 0.0
        %407 = vmatpush1.msra.mxu0 0.0
        %408 = vmatprep.subr.mxu0 0.0
        %409 = vmatpush1.msra.mxu0 0.0
        %410 = vmatprep.subr.mxu0 0.0
        %411 = vmatpush1.msra.mxu0 0.0
        %412 = vmatprep.subr.mxu0 0.0
        %413 = vmatpush1.msra.mxu0 0.0
        %414 = vmatprep.subr.mxu0 0.0
        %415 = vmatpush1.msra.mxu0 0.0
        %416 = vmatprep.subr.mxu0 0.0
        %417 = vmatpush1.msra.mxu0 0.0
        %418 = vmatprep.subr.mxu0 0.0
        %419 = vmatpush1.msra.mxu0 0.0
        %420 = vmatprep.subr.mxu0 0.0
        %421 = vmatpush1.msra.mxu0 0.0
        %422 = vmatprep.subr.mxu0 0.0
        %423 = vmatpush1.msra.mxu0 0.0
        %424 = vmatprep.subr.mxu0 0.0
        %425 = vmatpush1.msra.mxu0 0.0
        %426 = vmatprep.subr.mxu0 0.0
        %427 = vmatpush1.msra.mxu0 0.0
        %428 = vmatprep.subr.mxu0 0.0
        %429 = vmatpush1.msra.mxu0 0.0
        %430 = vmatprep.subr.mxu0 0.0
        %431 = vmatpush1.msra.mxu0 0.0
        %432 = vmatprep.subr.mxu0 0.0
        %433 = vmatpush1.msra.mxu0 0.0
        %434 = vmatprep.subr.mxu0 0.0
        %435 = vmatpush1.msra.mxu0 0.0
        %436 = vmatprep.subr.mxu0 0.0
        %437 = vmatpush1.msra.mxu0 0.0
        %438 = vmatprep.subr.mxu0 0.0
        %439 = vmatpush1.msra.mxu0 0.0
        %440 = vmatprep.subr.mxu0 0.0
        %441 = vmatpush1.msra.mxu0 0.0
        %442 = vmatprep.subr.mxu0 0.0
        %443 = vmatpush1.msra.mxu0 0.0
        %444 = vmatprep.subr.mxu0 0.0
        %445 = vmatpush1.msra.mxu0 0.0
        %446 = vmatprep.subr.mxu0 0.0
        %447 = vmatpush1.msra.mxu0 0.0
        %448 = vmatprep.subr.mxu0 0.0
        %449 = vmatpush1.msra.mxu0 0.0
        %450 = vmatprep.subr.mxu0 0.0
        %451 = vmatpush1.msra.mxu0 0.0
        %452 = vmatprep.subr.mxu0 0.0
        %453 = vmatpush1.msra.mxu0 0.0
        %454 = vmatprep.mubr.f32.mxu0 0.0
        %455 = vmatmul.mubr.f32.gmra.mrb[0].mxu0 %v388
        %v456 = vpop.f32.mrb[0].mxu0
        %v457 = vadd.f32 0.0, %v456
        %v458 = vpop.f32.mrb[0].mxu0
        %459 = vdwg.mxu0
        %461 = vrot.lane.b32.xlu0 %v366, 96
        %v462 = vpop.permute.xlu0 %461
        %v463 = vsel %vm387, %v462, 0
        %465 = vmatprep.subr.mxu0 0.0
        %466 = vmatpush1.msra.mxu0 %v376
        %467 = vmatprep.subr.mxu0 0.0
        %468 = vmatpush1.msra.mxu0 %v377
        %469 = vmatprep.subr.mxu0 0.0
        %470 = vmatpush1.msra.mxu0 %v378
        %471 = vmatprep.subr.mxu0 0.0
        %472 = vmatpush1.msra.mxu0 %v379
        %473 = vmatprep.subr.mxu0 0.0
        %474 = vmatpush1.msra.mxu0 0.0
        %475 = vmatprep.subr.mxu0 0.0
        %476 = vmatpush1.msra.mxu0 0.0
        %477 = vmatprep.subr.mxu0 0.0
        %478 = vmatpush1.msra.mxu0 0.0
        %479 = vmatprep.subr.mxu0 0.0
        %480 = vmatpush1.msra.mxu0 0.0
        %481 = vmatprep.subr.mxu0 0.0
        %482 = vmatpush1.msra.mxu0 0.0
        %483 = vmatprep.subr.mxu0 0.0
        %484 = vmatpush1.msra.mxu0 0.0
        %485 = vmatprep.subr.mxu0 0.0
        %486 = vmatpush1.msra.mxu0 0.0
        %487 = vmatprep.subr.mxu0 0.0
        %488 = vmatpush1.msra.mxu0 0.0
        %489 = vmatprep.subr.mxu0 0.0
        %490 = vmatpush1.msra.mxu0 0.0
        %491 = vmatprep.subr.mxu0 0.0
        %492 = vmatpush1.msra.mxu0 0.0
        %493 = vmatprep.subr.mxu0 0.0
        %494 = vmatpush1.msra.mxu0 0.0
        %495 = vmatprep.subr.mxu0 0.0
        %496 = vmatpush1.msra.mxu0 0.0
        %497 = vmatprep.subr.mxu0 0.0
        %498 = vmatpush1.msra.mxu0 0.0
        %499 = vmatprep.subr.mxu0 0.0
        %500 = vmatpush1.msra.mxu0 0.0
        %501 = vmatprep.subr.mxu0 0.0
        %502 = vmatpush1.msra.mxu0 0.0
        %503 = vmatprep.subr.mxu0 0.0
        %504 = vmatpush1.msra.mxu0 0.0
        %505 = vmatprep.subr.mxu0 0.0
        %506 = vmatpush1.msra.mxu0 0.0
        %507 = vmatprep.subr.mxu0 0.0
        %508 = vmatpush1.msra.mxu0 0.0
        %509 = vmatprep.subr.mxu0 0.0
        %510 = vmatpush1.msra.mxu0 0.0
        %511 = vmatprep.subr.mxu0 0.0
        %512 = vmatpush1.msra.mxu0 0.0
        %513 = vmatprep.subr.mxu0 0.0
        %514 = vmatpush1.msra.mxu0 0.0
        %515 = vmatprep.subr.mxu0 0.0
        %516 = vmatpush1.msra.mxu0 0.0
        %517 = vmatprep.subr.mxu0 0.0
        %518 = vmatpush1.msra.mxu0 0.0
        %519 = vmatprep.subr.mxu0 0.0
        %520 = vmatpush1.msra.mxu0 0.0
        %521 = vmatprep.subr.mxu0 0.0
        %522 = vmatpush1.msra.mxu0 0.0
        %523 = vmatprep.subr.mxu0 0.0
        %524 = vmatpush1.msra.mxu0 0.0
        %525 = vmatprep.subr.mxu0 0.0
        %526 = vmatpush1.msra.mxu0 0.0
        %527 = vmatprep.subr.mxu0 0.0
        %528 = vmatpush1.msra.mxu0 0.0
        %529 = vmatprep.mubr.f32.mxu0 0.0
        %530 = vmatmul.mubr.f32.gmra.mrb[0].mxu0 %v463
        %v531 = vpop.f32.mrb[0].mxu0
        %v532 = vadd.f32 %v457, %v531
        %v533 = vpop.f32.mrb[0].mxu0
        %534 = vdwg.mxu0
        %v535 = vld [vmem:[%s5] sm:$0x1]
        %v537 = vlaneseq
        %v538 = vshrl.u32 %v537, 7
        %v539 = vsub.s32 0, %v538
        %v540 = vrot.slane %v535, %v539
        %v542 = vadd.f32 %v532, %v540
        %v543 = vadd.f32 %v542, %v247
        %544 = vst.msk [vmem:[%s242] sm:$0xff] %vm248, %v543
        %s545 = sand.u32 %s159, 1
        %s546 = scalar_lea.sflag [#allocation3], %s545
        %s547 = sand.u32 %s159, 1
        %s548 = smul.addr %s547, 8
        %s549 = scalar_lea.vmem [#allocation2], %s548
        // Predicated region
        $region45: #{tpu_custom_call.1} parent=43 // pred_check
          %p550 = pneg %p169
        $region46: #{tpu_custom_call.1} parent=43 // pred_check_branch
          %552 = sbr.rel (%p550) target = $region48
        $region47: #{tpu_custom_call.1} parent=43 // pred_region
          %s554 = ssub.s32 128, 128
          %555 = vsyncadd %s546, %s554
          %s556 = smul.addr %s20, 128
          %s557 = scalar_lea.hbm %s6, %s556
          %s559 = sshll.u32 %s549, 4
          %s560 = int_to_ptr.vmem [resolvable:$true] %s559
          %562 = dma.vmem_to_hbm [thread:$0]  %s560, 128, %s557, %s546
        $region48: #{tpu_custom_call.1} parent=43 // pred_fallthru
          _
      $region44: #{tpu_custom_call.1} parent=5 // pred_fallthru
        _
      %p563 = scmp.le.s32.totalorder 2, %s15
      // Predicated region
      $region49: #{tpu_custom_call.1} parent=5 // pred_check
        %p564 = pneg %p563
      $region50: #{tpu_custom_call.1} parent=5 // pred_check_branch
        %566 = sbr.rel (%p564) target = $region52
      $region51: #{tpu_custom_call.1} parent=5 // pred_region
        %s567 = ssub.s32 %s15, 2
        // Predicated region
        $region53: #{tpu_custom_call.1} parent=51 // pred_check
          %p568 = pneg %p175
        $region54: #{tpu_custom_call.1} parent=51 // pred_check_branch
          %570 = sbr.rel (%p568) target = $region56
        $region55: #{tpu_custom_call.1} parent=51 // pred_region
          %s571 = sand.u32 %s160, 1
          %s572 = scalar_lea.sflag [#allocation3], %s571
          %s573 = sand.u32 %s160, 1
          %s574 = smul.addr %s573, 8
          %s575 = scalar_lea.vmem [#allocation2], %s574
          %576 = dma.done %s572, 128
        $region56: #{tpu_custom_call.1} parent=51 // pred_fallthru
          _
      $region52: #{tpu_custom_call.1} parent=5 // pred_fallthru
        _
    $region6: #{tpu_custom_call.1} parent=1 // loop_footer
      %s19 = sadd.s32 1, %s15
    $region7: #{tpu_custom_call.1} parent=1 // loop_footer_branch
      %14 = sbr.rel target = $region3
    $region8: #{tpu_custom_call.1} parent=1 // loop_exit
      _
    %577 = vsyncpa [#allocation3], 1
    %s578 = scalar_lea.sflag [#allocation3], 1
    %579 = vsyncpa %s578, 1

</llo_original>
